<compile_context>
chip_gen: v7x
topology: tpu7x:2x2x1
jax: 0.10.0
libtpu: 0.0.40
codegen_flags: <defaults>
</compile_context>

<pallas_src>
import functools
import math

import jax
import jax.numpy as jnp
from jax import lax
from jax.experimental import pallas as pl

D_MODEL = 32
NHEAD = 4
DIM_FF = 16
HEAD_DIM = D_MODEL // NHEAD
SEQ = 8
BATCH = 2

_LANES = 128
_SLAB_ROWS = 3 * D_MODEL + 24   # 3 weight blocks (E rows each) + 3 bias rows in 8-row slots


def _encoder_layer_kernel(x_ref, w_ref, o_ref, *, nhead, batch):
    x = x_ref[...]                                   # (R, E) f32, rows ordered (s, b)
    R, E = x.shape
    hd = E // nhead

    # ---- static slices of the packed weight slab (sublane offsets multiples of 8,
    #      all lane slices are prefixes -> no relayout) ----
    wqkv = w_ref[0:E, 0:3 * E]                       # (E, 3E)  [q*scale | k | v]
    wo   = w_ref[E:2 * E, 0:E]                       # (E, E)
    wff  = w_ref[2 * E:3 * E, 0:E]                   # (E, E) = I + W1 @ W2
    bqkv = w_ref[3 * E:3 * E + 1, 0:3 * E]           # (1, 3E)
    bo   = w_ref[3 * E + 8:3 * E + 9, 0:E]           # (1, E)
    bff  = w_ref[3 * E + 16:3 * E + 17, 0:E]         # (1, E)

    # ---- batch-separation additive mask (row r belongs to batch r % B) ----
    rb = lax.broadcasted_iota(jnp.int32, (R, R), 0) % batch
    cb = lax.broadcasted_iota(jnp.int32, (R, R), 1) % batch
    neg_mask = jnp.where(rb == cb, 0.0, -1e30).astype(jnp.float32)

    # ---- fused QKV in-projection: one MXU matmul (1/sqrt(hd) folded into weights) ----
    qkv = jnp.dot(x, wqkv, preferred_element_type=jnp.float32) + bqkv    # (R, 3E)

    # ---- per-head attention (static 4-iteration loop over lane slices) ----
    ctx_heads = []
    for h in range(nhead):
        q = qkv[:, h * hd:(h + 1) * hd]                                   # (R, hd)
        k = qkv[:, E + h * hd:E + (h + 1) * hd]
        v = qkv[:, 2 * E + h * hd:2 * E + (h + 1) * hd]
        s = jnp.dot(q, k.T, preferred_element_type=jnp.float32) + neg_mask
        s = s - jnp.max(s, axis=-1, keepdims=True)
        p = jnp.exp(s)
        denom = jnp.sum(p, axis=-1, keepdims=True)                        # (R, 1), >= 1
        ctx = jnp.dot(p, v, preferred_element_type=jnp.float32) / denom   # exact softmax
        ctx_heads.append(ctx)
    ctx_all = jnp.concatenate(ctx_heads, axis=1)      # (R, E), PyTorch head order

    # ---- out-projection + residual 1 (dropout1 identity, p=0) ----
    src1 = x + jnp.dot(ctx_all, wo, preferred_element_type=jnp.float32) + bo

    # ---- folded feed-forward + residual 2:
    #      LeakyReLU(negative_slope=1.0) == identity, dropouts p=0, hence
    #      out = src1 + (src1@W1)@W2 + (b1@W2 + b2) = src1 @ (I + W1@W2) + b_ff ----
    o_ref[...] = jnp.dot(src1, wff, preferred_element_type=jnp.float32) + bff


@jax.jit
def transformer_encoder_layer(src, slab):
    """src: (S, B, E) float32, PyTorch MultiheadAttention convention."""
    S, B, E = src.shape
    R = S * B
    x2 = src.astype(jnp.float32).reshape(R, E)        # contiguous collapse, no transpose

    out2 = pl.pallas_call(
        functools.partial(_encoder_layer_kernel, nhead=NHEAD, batch=B),
        out_shape=jax.ShapeDtypeStruct((R, E), jnp.float32),
        in_specs=[
            pl.BlockSpec((R, E), lambda: (0, 0)),
            pl.BlockSpec((_SLAB_ROWS, _LANES), lambda: (0, 0)),
        ],
        out_specs=pl.BlockSpec((R, E), lambda: (0, 0)),
    )(x2, slab)
    return out2.reshape(S, B, E)


def init_params(key):
    """Deterministic synthetic parameters matching the PyTorch module's shapes,
    pre-transposed from (out,in) to (in,out) so computation is x @ W."""
    E, F = D_MODEL, DIM_FF
    keys = jax.random.split(key, 8)
    in_proj_w = jax.random.normal(keys[0], (3 * E, E), jnp.float32) / math.sqrt(E)
    in_proj_b = jax.random.normal(keys[1], (3 * E,), jnp.float32) * 0.02
    wo = jax.random.normal(keys[2], (E, E), jnp.float32) / math.sqrt(E)
    bo = jax.random.normal(keys[3], (E,), jnp.float32) * 0.02
    w1 = jax.random.normal(keys[4], (F, E), jnp.float32) / math.sqrt(E)
    b1 = jax.random.normal(keys[5], (F,), jnp.float32) * 0.02
    w2 = jax.random.normal(keys[6], (E, F), jnp.float32) / math.sqrt(F)
    b2 = jax.random.normal(keys[7], (E,), jnp.float32) * 0.02
    return dict(
        wq=in_proj_w[:E].T,        bq=in_proj_b[:E].reshape(1, E),
        wk=in_proj_w[E:2 * E].T,   bk=in_proj_b[E:2 * E].reshape(1, E),
        wv=in_proj_w[2 * E:].T,    bv=in_proj_b[2 * E:].reshape(1, E),
        wo=wo.T,                   bo=bo.reshape(1, E),
        w1=w1.T,                   b1=b1.reshape(1, F),
        w2=w2.T,                   b2=b2.reshape(1, E),
    )


def pack_params(params, nhead=NHEAD):
    """One-time repack into a single tile-aligned (120, 128) f32 slab.

    Folding W_ff = I + W1@W2 and b_ff = b1@W2 + b2 is only valid because the module
    uses LeakyReLU(negative_slope=1.0) (identity) and dropout p=0."""
    E = params["wq"].shape[0]
    hd = E // nhead
    scale = 1.0 / math.sqrt(hd)

    wqkv = jnp.concatenate([params["wq"] * scale, params["wk"], params["wv"]], axis=1)
    bqkv = jnp.concatenate([params["bq"] * scale, params["bk"], params["bv"]], axis=1)
    wff = jnp.eye(E, dtype=jnp.float32) + params["w1"] @ params["w2"]
    bff = params["b1"] @ params["w2"] + params["b2"]

    slab = jnp.zeros((_SLAB_ROWS, _LANES), jnp.float32)
    slab = slab.at[0:E, 0:3 * E].set(wqkv)
    slab = slab.at[E:2 * E, 0:E].set(params["wo"])
    slab = slab.at[2 * E:3 * E, 0:E].set(wff)
    slab = slab.at[3 * E, 0:3 * E].set(bqkv[0])
    slab = slab.at[3 * E + 8, 0:E].set(params["bo"][0])
    slab = slab.at[3 * E + 16, 0:E].set(bff[0])
    return slab


def reference(src, params):
    """Pure-JAX mirror of the PyTorch forward for validation."""
    x = src.astype(jnp.float32)                                        # (S, B, E)
    S, B, E = x.shape
    hd = E // NHEAD
    q = x @ params["wq"] + params["bq"]
    k = x @ params["wk"] + params["bk"]
    v = x @ params["wv"] + params["bv"]

    def split(t):                                                      # (S,B,E)->(B*H,S,hd)
        return t.reshape(S, B * NHEAD, hd).transpose(1, 0, 2)

    qh = split(q) * (1.0 / math.sqrt(hd))
    kh, vh = split(k), split(v)
    scores = jnp.einsum("hqd,hkd->hqk", qh, kh)
    p = jax.nn.softmax(scores, axis=-1)
    o = jnp.einsum("hqk,hkd->hqd", p, vh).transpose(1, 0, 2).reshape(S, B, E)
    attn = o @ params["wo"] + params["bo"]
    src1 = x + attn
    h1 = src1 @ params["w1"] + params["b1"]
    # LeakyReLU(negative_slope=1.0) is the identity; dropout p=0.
    ff = h1 @ params["w2"] + params["b2"]
    return src1 + ff


if __name__ == "__main__":
    key = jax.random.PRNGKey(0)
    pkey, xkey = jax.random.split(key)
    params = init_params(pkey)
    slab = pack_params(params)
    src = jax.random.normal(xkey, (SEQ, BATCH, D_MODEL), jnp.float32)

    out = transformer_encoder_layer(src, slab)
    out = jax.block_until_ready(out)

    ref = reference(src, params)
    assert out.shape == (SEQ, BATCH, D_MODEL)
    err = float(jnp.max(jnp.abs(out - ref)))
    # Exact softmax division (no approx reciprocal) -> only f32 reassociation error left.
    assert jnp.allclose(out, ref, rtol=1e-3, atol=1e-3), err
    print("KERNEL_OK")
</pallas_src>

<mosaic_0001>
module attributes {stable_mosaic.version = 11 : i64} {
  func.func @_encoder_layer_kernel(%arg0: memref<16x32xf32, #tpu.memory_space<vmem>>, %arg1: memref<120x128xf32, #tpu.memory_space<vmem>>, %arg2: memref<16x32xf32, #tpu.memory_space<vmem>>) attributes {dimension_semantics = [], scalar_prefetch = 0 : i64, scratch_operands = 0 : i64, tpu.core_type = #tpu.core_type<tc>} {
    %c0 = arith.constant 0 : index
    %c0_0 = arith.constant 0 : index
    %0 = vector.load %arg0[%c0, %c0_0] : memref<16x32xf32, #tpu.memory_space<vmem>>, vector<16x32xf32>
    %c0_1 = arith.constant 0 : index
    %c0_2 = arith.constant 0 : index
    %1 = vector.load %arg1[%c0_1, %c0_2] : memref<120x128xf32, #tpu.memory_space<vmem>>, vector<32x96xf32>
    %c32 = arith.constant 32 : index
    %c0_3 = arith.constant 0 : index
    %2 = vector.load %arg1[%c32, %c0_3] : memref<120x128xf32, #tpu.memory_space<vmem>>, vector<32x32xf32>
    %c64 = arith.constant 64 : index
    %c0_4 = arith.constant 0 : index
    %3 = vector.load %arg1[%c64, %c0_4] : memref<120x128xf32, #tpu.memory_space<vmem>>, vector<32x32xf32>
    %c96 = arith.constant 96 : index
    %c0_5 = arith.constant 0 : index
    %4 = vector.load %arg1[%c96, %c0_5] : memref<120x128xf32, #tpu.memory_space<vmem>>, vector<1x96xf32>
    %c104 = arith.constant 104 : index
    %c0_6 = arith.constant 0 : index
    %5 = vector.load %arg1[%c104, %c0_6] : memref<120x128xf32, #tpu.memory_space<vmem>>, vector<1x32xf32>
    %c112 = arith.constant 112 : index
    %c0_7 = arith.constant 0 : index
    %6 = vector.load %arg1[%c112, %c0_7] : memref<120x128xf32, #tpu.memory_space<vmem>>, vector<1x32xf32>
    %7 = tpu.iota {dimensions = array<i32: 0>} : vector<16x16xi32>
    %c2_i32 = arith.constant 2 : i32
    %c0_i32 = arith.constant 0 : i32
    %8 = arith.cmpi eq, %c2_i32, %c0_i32 : i32
    %c1_i32 = arith.constant 1 : i32
    %9 = arith.select %8, %c1_i32, %c2_i32 : i32
    %10 = vector.broadcast %9 : i32 to vector<16x16xi32>
    %11 = arith.remsi %7, %10 : vector<16x16xi32>
    %c0_i32_8 = arith.constant 0 : i32
    %12 = vector.broadcast %c0_i32_8 : i32 to vector<16x16xi32>
    %13 = arith.cmpi ne, %11, %12 : vector<16x16xi32>
    %c0_i32_9 = arith.constant 0 : i32
    %14 = vector.broadcast %c0_i32_9 : i32 to vector<16x16xi32>
    %15 = arith.cmpi slt, %11, %14 : vector<16x16xi32>
    %c0_i32_10 = arith.constant 0 : i32
    %16 = arith.cmpi slt, %9, %c0_i32_10 : i32
    %17 = vector.broadcast %16 : i1 to vector<16x16xi1>
    %18 = vector.broadcast %17 : vector<16x16xi1> to vector<16x16xi1>
    %19 = arith.xori %15, %18 : vector<16x16xi1>
    %20 = arith.andi %19, %13 : vector<16x16xi1>
    %21 = vector.broadcast %9 : i32 to vector<16x16xi32>
    %22 = arith.addi %11, %21 : vector<16x16xi32>
    %23 = arith.select %20, %22, %11 : vector<16x16xi1>, vector<16x16xi32>
    %24 = tpu.iota {dimensions = array<i32: 1>} : vector<16x16xi32>
    %c2_i32_11 = arith.constant 2 : i32
    %c0_i32_12 = arith.constant 0 : i32
    %25 = arith.cmpi eq, %c2_i32_11, %c0_i32_12 : i32
    %c1_i32_13 = arith.constant 1 : i32
    %26 = arith.select %25, %c1_i32_13, %c2_i32_11 : i32
    %27 = vector.broadcast %26 : i32 to vector<16x16xi32>
    %28 = arith.remsi %24, %27 : vector<16x16xi32>
    %c0_i32_14 = arith.constant 0 : i32
    %29 = vector.broadcast %c0_i32_14 : i32 to vector<16x16xi32>
    %30 = arith.cmpi ne, %28, %29 : vector<16x16xi32>
    %c0_i32_15 = arith.constant 0 : i32
    %31 = vector.broadcast %c0_i32_15 : i32 to vector<16x16xi32>
    %32 = arith.cmpi slt, %28, %31 : vector<16x16xi32>
    %c0_i32_16 = arith.constant 0 : i32
    %33 = arith.cmpi slt, %26, %c0_i32_16 : i32
    %34 = vector.broadcast %33 : i1 to vector<16x16xi1>
    %35 = vector.broadcast %34 : vector<16x16xi1> to vector<16x16xi1>
    %36 = arith.xori %32, %35 : vector<16x16xi1>
    %37 = arith.andi %36, %30 : vector<16x16xi1>
    %38 = vector.broadcast %26 : i32 to vector<16x16xi32>
    %39 = arith.addi %28, %38 : vector<16x16xi32>
    %40 = arith.select %37, %39, %28 : vector<16x16xi1>, vector<16x16xi32>
    %41 = arith.cmpi eq, %23, %40 : vector<16x16xi32>
    %cst = arith.constant 0.000000e+00 : f32
    %cst_17 = arith.constant -1.000000e+30 : f32
    %42 = vector.broadcast %cst : f32 to vector<16x16xf32>
    %43 = vector.broadcast %cst_17 : f32 to vector<16x16xf32>
    %44 = arith.select %41, %42, %43 : vector<16x16xi1>, vector<16x16xf32>
    %cst_18 = arith.constant dense<0.000000e+00> : vector<16x96xf32>
    %45 = tpu.matmul %0, %1, %cst_18 {dimension_numbers = #tpu.dot_dimension_numbers<[1], [0], [0], [1], [0, 0, 1, 1], [], []>} : vector<16x32xf32>, vector<32x96xf32>, vector<16x96xf32> -> vector<16x96xf32>
    %46 = vector.broadcast %4 : vector<1x96xf32> to vector<16x96xf32>
    %47 = arith.addf %45, %46 : vector<16x96xf32>
    %48 = vector.extract_strided_slice %47 {offsets = [0, 0], sizes = [16, 8], strides = [1, 1]} : vector<16x96xf32> to vector<16x8xf32>
    %49 = vector.extract_strided_slice %47 {offsets = [0, 32], sizes = [16, 8], strides = [1, 1]} : vector<16x96xf32> to vector<16x8xf32>
    %50 = vector.extract_strided_slice %47 {offsets = [0, 64], sizes = [16, 8], strides = [1, 1]} : vector<16x96xf32> to vector<16x8xf32>
    %51 = tpu.transpose %49, [1, 0] : vector<16x8xf32> -> vector<8x16xf32>
    %cst_19 = arith.constant dense<0.000000e+00> : vector<16x16xf32>
    %52 = tpu.matmul %48, %51, %cst_19 {dimension_numbers = #tpu.dot_dimension_numbers<[1], [0], [0], [1], [0, 0, 1, 1], [], []>} : vector<16x8xf32>, vector<8x16xf32>, vector<16x16xf32> -> vector<16x16xf32>
    %53 = arith.addf %52, %44 : vector<16x16xf32>
    %cst_20 = arith.constant dense<0xFF800000> : vector<16xf32>
    %54 = vector.multi_reduction <maximumf>, %53, %cst_20 [1] : vector<16x16xf32> to vector<16xf32>
    %55 = vector.shape_cast %54 : vector<16xf32> to vector<16x1xf32>
    %56 = vector.broadcast %55 : vector<16x1xf32> to vector<16x16xf32>
    %57 = arith.subf %53, %56 : vector<16x16xf32>
    %58 = math.exp %57 : vector<16x16xf32>
    %cst_21 = arith.constant dense<0.000000e+00> : vector<16xf32>
    %59 = vector.multi_reduction <add>, %58, %cst_21 [1] : vector<16x16xf32> to vector<16xf32>
    %60 = vector.shape_cast %59 : vector<16xf32> to vector<16x1xf32>
    %cst_22 = arith.constant dense<0.000000e+00> : vector<16x8xf32>
    %61 = tpu.matmul %58, %50, %cst_22 {dimension_numbers = #tpu.dot_dimension_numbers<[1], [0], [0], [1], [0, 0, 1, 1], [], []>} : vector<16x16xf32>, vector<16x8xf32>, vector<16x8xf32> -> vector<16x8xf32>
    %62 = vector.broadcast %60 : vector<16x1xf32> to vector<16x8xf32>
    %63 = arith.divf %61, %62 : vector<16x8xf32>
    %64 = vector.extract_strided_slice %47 {offsets = [0, 8], sizes = [16, 8], strides = [1, 1]} : vector<16x96xf32> to vector<16x8xf32>
    %65 = vector.extract_strided_slice %47 {offsets = [0, 40], sizes = [16, 8], strides = [1, 1]} : vector<16x96xf32> to vector<16x8xf32>
    %66 = vector.extract_strided_slice %47 {offsets = [0, 72], sizes = [16, 8], strides = [1, 1]} : vector<16x96xf32> to vector<16x8xf32>
    %67 = tpu.transpose %65, [1, 0] : vector<16x8xf32> -> vector<8x16xf32>
    %cst_23 = arith.constant dense<0.000000e+00> : vector<16x16xf32>
    %68 = tpu.matmul %64, %67, %cst_23 {dimension_numbers = #tpu.dot_dimension_numbers<[1], [0], [0], [1], [0, 0, 1, 1], [], []>} : vector<16x8xf32>, vector<8x16xf32>, vector<16x16xf32> -> vector<16x16xf32>
    %69 = arith.addf %68, %44 : vector<16x16xf32>
    %cst_24 = arith.constant dense<0xFF800000> : vector<16xf32>
    %70 = vector.multi_reduction <maximumf>, %69, %cst_24 [1] : vector<16x16xf32> to vector<16xf32>
    %71 = vector.shape_cast %70 : vector<16xf32> to vector<16x1xf32>
    %72 = vector.broadcast %71 : vector<16x1xf32> to vector<16x16xf32>
    %73 = arith.subf %69, %72 : vector<16x16xf32>
    %74 = math.exp %73 : vector<16x16xf32>
    %cst_25 = arith.constant dense<0.000000e+00> : vector<16xf32>
    %75 = vector.multi_reduction <add>, %74, %cst_25 [1] : vector<16x16xf32> to vector<16xf32>
    %76 = vector.shape_cast %75 : vector<16xf32> to vector<16x1xf32>
    %cst_26 = arith.constant dense<0.000000e+00> : vector<16x8xf32>
    %77 = tpu.matmul %74, %66, %cst_26 {dimension_numbers = #tpu.dot_dimension_numbers<[1], [0], [0], [1], [0, 0, 1, 1], [], []>} : vector<16x16xf32>, vector<16x8xf32>, vector<16x8xf32> -> vector<16x8xf32>
    %78 = vector.broadcast %76 : vector<16x1xf32> to vector<16x8xf32>
    %79 = arith.divf %77, %78 : vector<16x8xf32>
    %80 = vector.extract_strided_slice %47 {offsets = [0, 16], sizes = [16, 8], strides = [1, 1]} : vector<16x96xf32> to vector<16x8xf32>
    %81 = vector.extract_strided_slice %47 {offsets = [0, 48], sizes = [16, 8], strides = [1, 1]} : vector<16x96xf32> to vector<16x8xf32>
    %82 = vector.extract_strided_slice %47 {offsets = [0, 80], sizes = [16, 8], strides = [1, 1]} : vector<16x96xf32> to vector<16x8xf32>
    %83 = tpu.transpose %81, [1, 0] : vector<16x8xf32> -> vector<8x16xf32>
    %cst_27 = arith.constant dense<0.000000e+00> : vector<16x16xf32>
    %84 = tpu.matmul %80, %83, %cst_27 {dimension_numbers = #tpu.dot_dimension_numbers<[1], [0], [0], [1], [0, 0, 1, 1], [], []>} : vector<16x8xf32>, vector<8x16xf32>, vector<16x16xf32> -> vector<16x16xf32>
    %85 = arith.addf %84, %44 : vector<16x16xf32>
    %cst_28 = arith.constant dense<0xFF800000> : vector<16xf32>
    %86 = vector.multi_reduction <maximumf>, %85, %cst_28 [1] : vector<16x16xf32> to vector<16xf32>
    %87 = vector.shape_cast %86 : vector<16xf32> to vector<16x1xf32>
    %88 = vector.broadcast %87 : vector<16x1xf32> to vector<16x16xf32>
    %89 = arith.subf %85, %88 : vector<16x16xf32>
    %90 = math.exp %89 : vector<16x16xf32>
    %cst_29 = arith.constant dense<0.000000e+00> : vector<16xf32>
    %91 = vector.multi_reduction <add>, %90, %cst_29 [1] : vector<16x16xf32> to vector<16xf32>
    %92 = vector.shape_cast %91 : vector<16xf32> to vector<16x1xf32>
    %cst_30 = arith.constant dense<0.000000e+00> : vector<16x8xf32>
    %93 = tpu.matmul %90, %82, %cst_30 {dimension_numbers = #tpu.dot_dimension_numbers<[1], [0], [0], [1], [0, 0, 1, 1], [], []>} : vector<16x16xf32>, vector<16x8xf32>, vector<16x8xf32> -> vector<16x8xf32>
    %94 = vector.broadcast %92 : vector<16x1xf32> to vector<16x8xf32>
    %95 = arith.divf %93, %94 : vector<16x8xf32>
    %96 = vector.extract_strided_slice %47 {offsets = [0, 24], sizes = [16, 8], strides = [1, 1]} : vector<16x96xf32> to vector<16x8xf32>
    %97 = vector.extract_strided_slice %47 {offsets = [0, 56], sizes = [16, 8], strides = [1, 1]} : vector<16x96xf32> to vector<16x8xf32>
    %98 = vector.extract_strided_slice %47 {offsets = [0, 88], sizes = [16, 8], strides = [1, 1]} : vector<16x96xf32> to vector<16x8xf32>
    %99 = tpu.transpose %97, [1, 0] : vector<16x8xf32> -> vector<8x16xf32>
    %cst_31 = arith.constant dense<0.000000e+00> : vector<16x16xf32>
    %100 = tpu.matmul %96, %99, %cst_31 {dimension_numbers = #tpu.dot_dimension_numbers<[1], [0], [0], [1], [0, 0, 1, 1], [], []>} : vector<16x8xf32>, vector<8x16xf32>, vector<16x16xf32> -> vector<16x16xf32>
    %101 = arith.addf %100, %44 : vector<16x16xf32>
    %cst_32 = arith.constant dense<0xFF800000> : vector<16xf32>
    %102 = vector.multi_reduction <maximumf>, %101, %cst_32 [1] : vector<16x16xf32> to vector<16xf32>
    %103 = vector.shape_cast %102 : vector<16xf32> to vector<16x1xf32>
    %104 = vector.broadcast %103 : vector<16x1xf32> to vector<16x16xf32>
    %105 = arith.subf %101, %104 : vector<16x16xf32>
    %106 = math.exp %105 : vector<16x16xf32>
    %cst_33 = arith.constant dense<0.000000e+00> : vector<16xf32>
    %107 = vector.multi_reduction <add>, %106, %cst_33 [1] : vector<16x16xf32> to vector<16xf32>
    %108 = vector.shape_cast %107 : vector<16xf32> to vector<16x1xf32>
    %cst_34 = arith.constant dense<0.000000e+00> : vector<16x8xf32>
    %109 = tpu.matmul %106, %98, %cst_34 {dimension_numbers = #tpu.dot_dimension_numbers<[1], [0], [0], [1], [0, 0, 1, 1], [], []>} : vector<16x16xf32>, vector<16x8xf32>, vector<16x8xf32> -> vector<16x8xf32>
    %110 = vector.broadcast %108 : vector<16x1xf32> to vector<16x8xf32>
    %111 = arith.divf %109, %110 : vector<16x8xf32>
    %112 = tpu.concatenate %63, %79, %95, %111 in 1 : vector<16x8xf32>, vector<16x8xf32>, vector<16x8xf32>, vector<16x8xf32> -> vector<16x32xf32>
    %cst_35 = arith.constant dense<0.000000e+00> : vector<16x32xf32>
    %113 = tpu.matmul %112, %2, %cst_35 {dimension_numbers = #tpu.dot_dimension_numbers<[1], [0], [0], [1], [0, 0, 1, 1], [], []>} : vector<16x32xf32>, vector<32x32xf32>, vector<16x32xf32> -> vector<16x32xf32>
    %114 = arith.addf %0, %113 : vector<16x32xf32>
    %115 = vector.broadcast %5 : vector<1x32xf32> to vector<16x32xf32>
    %116 = arith.addf %114, %115 : vector<16x32xf32>
    %cst_36 = arith.constant dense<0.000000e+00> : vector<16x32xf32>
    %117 = tpu.matmul %116, %3, %cst_36 {dimension_numbers = #tpu.dot_dimension_numbers<[1], [0], [0], [1], [0, 0, 1, 1], [], []>} : vector<16x32xf32>, vector<32x32xf32>, vector<16x32xf32> -> vector<16x32xf32>
    %118 = vector.broadcast %6 : vector<1x32xf32> to vector<16x32xf32>
    %119 = arith.addf %117, %118 : vector<16x32xf32>
    %c0_37 = arith.constant 0 : index
    %c0_38 = arith.constant 0 : index
    %120 = vector.load %arg2[%c0_37, %c0_38] : memref<16x32xf32, #tpu.memory_space<vmem>>, vector<16x32xf32>
    tpu.vector_store %arg2[%c0_37, %c0_38], %119 {strides = array<i32>} : memref<16x32xf32, #tpu.memory_space<vmem>>, vector<16x32xf32>,
    return
  }
}

</mosaic_0001>

<llo_original>
// kernel: transformer_encoder_layer.1
$region0: #{transformer_encoder_layer.1}
  #allocation0 [shape = 'u32[]', space=smem, size = 0x4, offset = 0x4, fixed_abs, tag = 'smem constant byte address 0x4 - core index']
  #allocation1 [shape = 'u32[144,128]{1,0:T(1,128)}', space=vmem, size = 0x12000, scoped, tag = 'internal scratch']
  %s0 = inlined_call_operand.hbm [shape: f32[16,32], index: 0, kind: input, shape index: {}]
  %s1 = inlined_call_operand.hbm [shape: f32[120,128], index: 1, kind: input, shape index: {}]
  %s2 = inlined_call_operand.hbm [shape: f32[16,32], index: 2, kind: output, shape index: {}]
  %s3 = sld [smem:[#allocation0]]
  $region26: #{transformer_encoder_layer.1} parent=0
    _
  %s5 = ssub.s32 1, %s3
  %s6 = scalar_select 0, %s5, %s3
  $region1: #{transformer_encoder_layer.1} parent=0
    #allocation2 [shape = 'u8[8192]{0}', space=vmem, size = 0x2000, scoped, tag = 'input window, operand 0, single buffered']
    #allocation3 [shape = 's32[1]{0}', space=sflag, size = 0x4, scoped, tag = 'scoped memory for transformer_encoder_layer.1']
    #allocation4 [shape = 's32[1]{0}', space=sflag, size = 0x4, scoped, tag = 'scoped memory for transformer_encoder_layer.1']
    #allocation5 [shape = 'u8[61440]{0}', space=vmem, size = 0xf000, scoped, tag = 'input window, operand 1, single buffered']
    #allocation6 [shape = 's32[1]{0}', space=sflag, size = 0x4, scoped, tag = 'scoped memory for transformer_encoder_layer.1']
    #allocation7 [shape = 'u8[8192]{0}', space=vmem, size = 0x2000, scoped, tag = 'output window, operand 0, single buffered']
    %7 = vsyncpa [#allocation3], 0
    %8 = vsyncpa [#allocation6], 0
    %9 = vsyncpa [#allocation4], 0
    // Predicated region
    $region2: #{transformer_encoder_layer.1} parent=1 // pred_check
      _
    $region3: #{transformer_encoder_layer.1} parent=1 // pred_check_branch
      %11 = sbr.rel (0) target = $region5
    $region4: #{transformer_encoder_layer.1} parent=1 // pred_region
      %s13 = ssub.s32 256, 256
      %14 = vsyncadd [#allocation3], %s13
      %s15 = sshll.u32 [#allocation2], 4
      %s16 = int_to_ptr.vmem [resolvable:$true] %s15
      %21 = dma.hbm_to_vmem [thread:$0]  %s0, 256, %s16, [#allocation3], 128, 128, 8
    $region5: #{transformer_encoder_layer.1} parent=1 // pred_fallthru
      _
    // Predicated region
    $region6: #{transformer_encoder_layer.1} parent=1 // pred_check
      _
    $region7: #{transformer_encoder_layer.1} parent=1 // pred_check_branch
      %23 = sbr.rel (0) target = $region9
    $region8: #{transformer_encoder_layer.1} parent=1 // pred_region
      %s25 = ssub.s32 1920, 1920
      %26 = vsyncadd [#allocation6], %s25
      %s27 = sshll.u32 [#allocation5], 4
      %s28 = int_to_ptr.vmem [resolvable:$true] %s27
      %33 = dma.hbm_to_vmem [thread:$0]  %s1, 1920, %s28, [#allocation6], 128, 128, 8
    $region9: #{transformer_encoder_layer.1} parent=1 // pred_fallthru
      _
    // Predicated region
    $region10: #{transformer_encoder_layer.1} parent=1 // pred_check
      _
    $region11: #{transformer_encoder_layer.1} parent=1 // pred_check_branch
      %35 = sbr.rel (0) target = $region13
    $region12: #{transformer_encoder_layer.1} parent=1 // pred_region
      %36 = dma.done [#allocation3], 256
    $region13: #{transformer_encoder_layer.1} parent=1 // pred_fallthru
      _
    // Predicated region
    $region14: #{transformer_encoder_layer.1} parent=1 // pred_check
      _
    $region15: #{transformer_encoder_layer.1} parent=1 // pred_check_branch
      %38 = sbr.rel (0) target = $region17
    $region16: #{transformer_encoder_layer.1} parent=1 // pred_region
      %39 = dma.done [#allocation6], 1920
    $region17: #{transformer_encoder_layer.1} parent=1 // pred_fallthru
      _
    %v40 = vld [vmem:[#allocation2] sm:$0xff]
    %v41 = vld [vmem:[#allocation2 + $0x8] sm:$0xff]
    %v42 = vld [vmem:[#allocation5] sm:$0xff]
    %v43 = vld [vmem:[#allocation5 + $0x8] sm:$0xff]
    %v44 = vld [vmem:[#allocation5 + $0x10] sm:$0xff]
    %v45 = vld [vmem:[#allocation5 + $0x18] sm:$0xff]
    %v46 = vld [vmem:[#allocation5 + $0x20] sm:$0xff]
    %v47 = vld [vmem:[#allocation5 + $0x28] sm:$0xff]
    %v48 = vld [vmem:[#allocation5 + $0x30] sm:$0xff]
    %v49 = vld [vmem:[#allocation5 + $0x38] sm:$0xff]
    %v50 = vld [vmem:[#allocation5 + $0x40] sm:$0xff]
    %v51 = vld [vmem:[#allocation5 + $0x48] sm:$0xff]
    %v52 = vld [vmem:[#allocation5 + $0x50] sm:$0xff]
    %v53 = vld [vmem:[#allocation5 + $0x58] sm:$0xff]
    %v54 = vld [vmem:[#allocation5 + $0x60] sm:$0x1]
    %v55 = vld [vmem:[#allocation5 + $0x68] sm:$0x1]
    %v56 = vld [vmem:[#allocation5 + $0x70] sm:$0x1]
    %v57 = vlaneseq
    %v58 = vshrl.u32 %v57, 7
    %v59 = vadd.s32 %v58, 8
    %vm60 = vcmp.lt.s32.totalorder %v58, 0
    %v61 = vsub.s32 0, %v58
    %v62 = vsel %vm60, %v61, %v58
    %v63 = vshrl.u32 %v62, 1
    %v64 = vand.u32 %v62, 1
    %v65 = vsub.s32 0, %v64
    %v66 = vsel %vm60, %v65, %v64
    %vm67 = vcmp.lt.s32.totalorder %v59, 0
    %v68 = vsub.s32 0, %v59
    %v69 = vsel %vm67, %v68, %v59
    %v70 = vshrl.u32 %v69, 1
    %v71 = vand.u32 %v69, 1
    %v72 = vsub.s32 0, %v71
    %v73 = vsel %vm67, %v72, %v71
    %vm74 = vcmp.ne.s32.totalorder %v66, 0
    %vm75 = vcmp.ne.s32.totalorder %v73, 0
    %vm76 = vcmp.lt.s32.totalorder %v66, 0
    %vm77 = vcmp.lt.s32.totalorder %v73, 0
    %vm78 = vmand %vm76, %vm74
    %vm79 = vmand %vm77, %vm75
    %v80 = vadd.s32 %v66, 2
    %v81 = vadd.s32 %v73, 2
    %v82 = vsel %vm78, %v80, %v66
    %v83 = vsel %vm79, %v81, %v73
    %v84 = vlaneseq
    %v85 = vand.u32 %v84, 127
    %vm86 = vcmp.lt.s32.totalorder %v85, 0
    %v87 = vsub.s32 0, %v85
    %v88 = vsel %vm86, %v87, %v85
    %v89 = vshrl.u32 %v88, 1
    %v90 = vand.u32 %v88, 1
    %v91 = vsub.s32 0, %v90
    %v92 = vsel %vm86, %v91, %v90
    %vm93 = vcmp.ne.s32.totalorder %v92, 0
    %vm94 = vcmp.lt.s32.totalorder %v92, 0
    %vm95 = vmand %vm94, %vm93
    %v96 = vadd.s32 %v92, 2
    %v97 = vsel %vm95, %v96, %v92
    %vm98 = vcmp.eq.s32.totalorder %v82, %v97
    %vm99 = vcmp.eq.s32.totalorder %v83, %v97
    %v100 = vsel %vm98, 0.0, -1e+30
    %v101 = vsel %vm99, 0.0, -1e+30
    %v102 = vlaneseq
    %v103 = vshrl.u32 %v102, 7
    %v104 = vsub.s32 0, %v103
    %v105 = vrot.slane %v54, %v104
    %vm106 = vcmask 261120
    %v108 = vsel %vm106, %v40, 0
    %v111 = vsel %vm106, %v41, 0
    %113 = vmatprep.subr.mxu0 0.0
    %114 = vmatpush1.msra.mxu0 %v42
    %115 = vmatprep.subr.mxu0 0.0
    %116 = vmatpush1.msra.mxu0 %v43
    %117 = vmatprep.subr.mxu0 0.0
    %118 = vmatpush1.msra.mxu0 %v44
    %119 = vmatprep.subr.mxu0 0.0
    %120 = vmatpush1.msra.mxu0 %v45
    %121 = vmatprep.subr.mxu0 0.0
    %122 = vmatpush1.msra.mxu0 0.0
    %123 = vmatprep.subr.mxu0 0.0
    %124 = vmatpush1.msra.mxu0 0.0
    %125 = vmatprep.subr.mxu0 0.0
    %126 = vmatpush1.msra.mxu0 0.0
    %127 = vmatprep.subr.mxu0 0.0
    %128 = vmatpush1.msra.mxu0 0.0
    %129 = vmatprep.subr.mxu0 0.0
    %130 = vmatpush1.msra.mxu0 0.0
    %131 = vmatprep.subr.mxu0 0.0
    %132 = vmatpush1.msra.mxu0 0.0
    %133 = vmatprep.subr.mxu0 0.0
    %134 = vmatpush1.msra.mxu0 0.0
    %135 = vmatprep.subr.mxu0 0.0
    %136 = vmatpush1.msra.mxu0 0.0
    %137 = vmatprep.subr.mxu0 0.0
    %138 = vmatpush1.msra.mxu0 0.0
    %139 = vmatprep.subr.mxu0 0.0
    %140 = vmatpush1.msra.mxu0 0.0
    %141 = vmatprep.subr.mxu0 0.0
    %142 = vmatpush1.msra.mxu0 0.0
    %143 = vmatprep.subr.mxu0 0.0
    %144 = vmatpush1.msra.mxu0 0.0
    %145 = vmatprep.subr.mxu0 0.0
    %146 = vmatpush1.msra.mxu0 0.0
    %147 = vmatprep.subr.mxu0 0.0
    %148 = vmatpush1.msra.mxu0 0.0
    %149 = vmatprep.subr.mxu0 0.0
    %150 = vmatpush1.msra.mxu0 0.0
    %151 = vmatprep.subr.mxu0 0.0
    %152 = vmatpush1.msra.mxu0 0.0
    %153 = vmatprep.subr.mxu0 0.0
    %154 = vmatpush1.msra.mxu0 0.0
    %155 = vmatprep.subr.mxu0 0.0
    %156 = vmatpush1.msra.mxu0 0.0
    %157 = vmatprep.subr.mxu0 0.0
    %158 = vmatpush1.msra.mxu0 0.0
    %159 = vmatprep.subr.mxu0 0.0
    %160 = vmatpush1.msra.mxu0 0.0
    %161 = vmatprep.subr.mxu0 0.0
    %162 = vmatpush1.msra.mxu0 0.0
    %163 = vmatprep.subr.mxu0 0.0
    %164 = vmatpush1.msra.mxu0 0.0
    %165 = vmatprep.subr.mxu0 0.0
    %166 = vmatpush1.msra.mxu0 0.0
    %167 = vmatprep.subr.mxu0 0.0
    %168 = vmatpush1.msra.mxu0 0.0
    %169 = vmatprep.subr.mxu0 0.0
    %170 = vmatpush1.msra.mxu0 0.0
    %171 = vmatprep.subr.mxu0 0.0
    %172 = vmatpush1.msra.mxu0 0.0
    %173 = vmatprep.subr.mxu0 0.0
    %174 = vmatpush1.msra.mxu0 0.0
    %175 = vmatprep.subr.mxu0 0.0
    %176 = vmatpush1.msra.mxu0 0.0
    %177 = vmatprep.mubr.f32.mxu0 0.0
    %178 = vmatmul.mubr.f32.gmra.mrb[0].mxu0 %v108
    %v179 = vpop.f32.mrb[0].mxu0
    %v180 = vadd.f32 %v105, %v179
    %v181 = vpop.f32.mrb[0].mxu0
    %182 = vmatprep.mubr.f32.mxu0 0.0
    %183 = vmatmul.mubr.f32.gmra.mrb[0].mxu0 %v111
    %v184 = vpop.f32.mrb[0].mxu0
    %v185 = vadd.f32 %v105, %v184
    %v186 = vpop.f32.mrb[0].mxu0
    %187 = vdwg.mxu0
    %190 = vrot.lane.b32.xlu0 %v180, 96
    %v191 = vpop.permute.xlu0 %190
    %192 = vrot.lane.b32.xlu0 %v185, 96
    %v193 = vpop.permute.xlu0 %192
    %vm194 = vcmask 64512
    %v195 = vsel %vm194, %v180, 0
    %v197 = vsel %vm194, %v185, 0
    %v199 = vsel %vm194, %v191, 0
    %v201 = vsel %vm194, %v193, 0
    %203 = vmatprep.subr.mxu0 0.0
    %204 = vmatpush1.xpose.msra.mxu0 %v199
    %205 = vmatprep.subr.mxu0 0.0
    %206 = vmatpush1.xpose.msra.mxu0 %v201
    %207 = vmatprep.subr.mxu0 0.0
    %208 = vmatpush1.xpose.msra.mxu0 0.0
    %209 = vmatprep.subr.mxu0 0.0
    %210 = vmatpush1.xpose.msra.mxu0 0.0
    %211 = vmatprep.subr.mxu0 0.0
    %212 = vmatpush1.xpose.msra.mxu0 0.0
    %213 = vmatprep.subr.mxu0 0.0
    %214 = vmatpush1.xpose.msra.mxu0 0.0
    %215 = vmatprep.subr.mxu0 0.0
    %216 = vmatpush1.xpose.msra.mxu0 0.0
    %217 = vmatprep.subr.mxu0 0.0
    %218 = vmatpush1.xpose.msra.mxu0 0.0
    %219 = vmatprep.subr.mxu0 0.0
    %220 = vmatpush1.xpose.msra.mxu0 0.0
    %221 = vmatprep.subr.mxu0 0.0
    %222 = vmatpush1.xpose.msra.mxu0 0.0
    %223 = vmatprep.subr.mxu0 0.0
    %224 = vmatpush1.xpose.msra.mxu0 0.0
    %225 = vmatprep.subr.mxu0 0.0
    %226 = vmatpush1.xpose.msra.mxu0 0.0
    %227 = vmatprep.subr.mxu0 0.0
    %228 = vmatpush1.xpose.msra.mxu0 0.0
    %229 = vmatprep.subr.mxu0 0.0
    %230 = vmatpush1.xpose.msra.mxu0 0.0
    %231 = vmatprep.subr.mxu0 0.0
    %232 = vmatpush1.xpose.msra.mxu0 0.0
    %233 = vmatprep.subr.mxu0 0.0
    %234 = vmatpush1.xpose.msra.mxu0 0.0
    %235 = vmatprep.subr.mxu0 0.0
    %236 = vmatpush1.xpose.msra.mxu0 0.0
    %237 = vmatprep.subr.mxu0 0.0
    %238 = vmatpush1.xpose.msra.mxu0 0.0
    %239 = vmatprep.subr.mxu0 0.0
    %240 = vmatpush1.xpose.msra.mxu0 0.0
    %241 = vmatprep.subr.mxu0 0.0
    %242 = vmatpush1.xpose.msra.mxu0 0.0
    %243 = vmatprep.subr.mxu0 0.0
    %244 = vmatpush1.xpose.msra.mxu0 0.0
    %245 = vmatprep.subr.mxu0 0.0
    %246 = vmatpush1.xpose.msra.mxu0 0.0
    %247 = vmatprep.subr.mxu0 0.0
    %248 = vmatpush1.xpose.msra.mxu0 0.0
    %249 = vmatprep.subr.mxu0 0.0
    %250 = vmatpush1.xpose.msra.mxu0 0.0
    %251 = vmatprep.subr.mxu0 0.0
    %252 = vmatpush1.xpose.msra.mxu0 0.0
    %253 = vmatprep.subr.mxu0 0.0
    %254 = vmatpush1.xpose.msra.mxu0 0.0
    %255 = vmatprep.subr.mxu0 0.0
    %256 = vmatpush1.xpose.msra.mxu0 0.0
    %257 = vmatprep.subr.mxu0 0.0
    %258 = vmatpush1.xpose.msra.mxu0 0.0
    %259 = vmatprep.subr.mxu0 0.0
    %260 = vmatpush1.xpose.msra.mxu0 0.0
    %261 = vmatprep.subr.mxu0 0.0
    %262 = vmatpush1.xpose.msra.mxu0 0.0
    %263 = vmatprep.subr.mxu0 0.0
    %264 = vmatpush1.xpose.msra.mxu0 0.0
    %265 = vmatprep.subr.mxu0 0.0
    %266 = vmatpush1.xpose.msra.mxu0 0.0
    %267 = vmatprep.mubr.f32.mxu0 0.0
    %268 = vmatmul.mubr.f32.gmra.mrb[0].mxu0 %v195
    %v269 = vpop.f32.mrb[0].mxu0
    %v270 = vadd.f32 %v100, %v269
    %v271 = vpop.f32.mrb[0].mxu0
    %272 = vmatprep.mubr.f32.mxu0 0.0
    %273 = vmatmul.mubr.f32.gmra.mrb[0].mxu0 %v197
    %v274 = vpop.f32.mrb[0].mxu0
    %v275 = vadd.f32 %v101, %v274
    %v276 = vpop.f32.mrb[0].mxu0
    %277 = vdwg.mxu0
    %vm278 = vcmask 130048
    %v279 = vsel %vm278, %v270, -inf
    %280 = vmax.xlane.f32.xlu0 %v279
    %v281 = vpop.xlane.xlu0 %280
    %v282 = vsel %vm278, %v275, -inf
    %283 = vmax.xlane.f32.xlu0 %v282
    %v284 = vpop.xlane.xlu0 %283
    %v285 = vsub.f32 %v270, %v281
    %v286 = vsub.f32 %v275, %v284
    %v287 = vmul.f32 %v285, 1.442695
    %v288 = vpow.pop %v287
    %v289 = vmul.f32 %v286, 1.442695
    %v290 = vpow.pop %v289
    %v291 = vsel %vm278, %v288, 0.0
    %292 = vadd.xlane.f32.xlu0 %v291
    %v293 = vpop.xlane.xlu0 %292
    %v294 = vsel %vm278, %v290, 0.0
    %295 = vadd.xlane.f32.xlu0 %v294
    %v296 = vpop.xlane.xlu0 %295
    %297 = vrot.lane.b32.xlu0 %v180, 64
    %v298 = vpop.permute.xlu0 %297
    %299 = vrot.lane.b32.xlu0 %v185, 64
    %v300 = vpop.permute.xlu0 %299
    %v304 = vsel %vm278, %v288, 0
    %v307 = vsel %vm278, %v290, 0
    %309 = vmatprep.subr.mxu0 0.0
    %310 = vmatpush1.msra.mxu0 %v298
    %311 = vmatprep.subr.mxu0 0.0
    %312 = vmatpush1.msra.mxu0 %v300
    %313 = vmatprep.subr.mxu0 0.0
    %314 = vmatpush1.msra.mxu0 0.0
    %315 = vmatprep.subr.mxu0 0.0
    %316 = vmatpush1.msra.mxu0 0.0
    %317 = vmatprep.subr.mxu0 0.0
    %318 = vmatpush1.msra.mxu0 0.0
    %319 = vmatprep.subr.mxu0 0.0
    %320 = vmatpush1.msra.mxu0 0.0
    %321 = vmatprep.subr.mxu0 0.0
    %322 = vmatpush1.msra.mxu0 0.0
    %323 = vmatprep.subr.mxu0 0.0
    %324 = vmatpush1.msra.mxu0 0.0
    %325 = vmatprep.subr.mxu0 0.0
    %326 = vmatpush1.msra.mxu0 0.0
    %327 = vmatprep.subr.mxu0 0.0
    %328 = vmatpush1.msra.mxu0 0.0
    %329 = vmatprep.subr.mxu0 0.0
    %330 = vmatpush1.msra.mxu0 0.0
    %331 = vmatprep.subr.mxu0 0.0
    %332 = vmatpush1.msra.mxu0 0.0
    %333 = vmatprep.subr.mxu0 0.0
    %334 = vmatpush1.msra.mxu0 0.0
    %335 = vmatprep.subr.mxu0 0.0
    %336 = vmatpush1.msra.mxu0 0.0
    %337 = vmatprep.subr.mxu0 0.0
    %338 = vmatpush1.msra.mxu0 0.0
    %339 = vmatprep.subr.mxu0 0.0
    %340 = vmatpush1.msra.mxu0 0.0
    %341 = vmatprep.subr.mxu0 0.0
    %342 = vmatpush1.msra.mxu0 0.0
    %343 = vmatprep.subr.mxu0 0.0
    %344 = vmatpush1.msra.mxu0 0.0
    %345 = vmatprep.subr.mxu0 0.0
    %346 = vmatpush1.msra.mxu0 0.0
    %347 = vmatprep.subr.mxu0 0.0
    %348 = vmatpush1.msra.mxu0 0.0
    %349 = vmatprep.subr.mxu0 0.0
    %350 = vmatpush1.msra.mxu0 0.0
    %351 = vmatprep.subr.mxu0 0.0
    %352 = vmatpush1.msra.mxu0 0.0
    %353 = vmatprep.subr.mxu0 0.0
    %354 = vmatpush1.msra.mxu0 0.0
    %355 = vmatprep.subr.mxu0 0.0
    %356 = vmatpush1.msra.mxu0 0.0
    %357 = vmatprep.subr.mxu0 0.0
    %358 = vmatpush1.msra.mxu0 0.0
    %359 = vmatprep.subr.mxu0 0.0
    %360 = vmatpush1.msra.mxu0 0.0
    %361 = vmatprep.subr.mxu0 0.0
    %362 = vmatpush1.msra.mxu0 0.0
    %363 = vmatprep.subr.mxu0 0.0
    %364 = vmatpush1.msra.mxu0 0.0
    %365 = vmatprep.subr.mxu0 0.0
    %366 = vmatpush1.msra.mxu0 0.0
    %367 = vmatprep.subr.mxu0 0.0
    %368 = vmatpush1.msra.mxu0 0.0
    %369 = vmatprep.subr.mxu0 0.0
    %370 = vmatpush1.msra.mxu0 0.0
    %371 = vmatprep.subr.mxu0 0.0
    %372 = vmatpush1.msra.mxu0 0.0
    %373 = vmatprep.mubr.f32.mxu0 0.0
    %374 = vmatmul.mubr.f32.gmra.mrb[0].mxu0 %v304
    %v375 = vpop.f32.mrb[0].mxu0
    %v376 = vadd.f32 0.0, %v375
    %v377 = vpop.f32.mrb[0].mxu0
    %378 = vmatprep.mubr.f32.mxu0 0.0
    %379 = vmatmul.mubr.f32.gmra.mrb[0].mxu0 %v307
    %v380 = vpop.f32.mrb[0].mxu0
    %v381 = vadd.f32 0.0, %v380
    %v382 = vpop.f32.mrb[0].mxu0
    %383 = vdwg.mxu0
    %v384 = vrcp.pop %v293
    %v385 = vmul.f32 %v376, %v384
    %v386 = vrcp.pop %v296
    %v387 = vmul.f32 %v381, %v386
    %388 = vrot.lane.b32.xlu0 %v180, 120
    %v389 = vpop.permute.xlu0 %388
    %390 = vrot.lane.b32.xlu0 %v185, 120
    %v391 = vpop.permute.xlu0 %390
    %392 = vrot.lane.b32.xlu0 %v180, 88
    %v393 = vpop.permute.xlu0 %392
    %394 = vrot.lane.b32.xlu0 %v185, 88
    %v395 = vpop.permute.xlu0 %394
    %v396 = vsel %vm194, %v389, 0
    %v398 = vsel %vm194, %v391, 0
    %v400 = vsel %vm194, %v393, 0
    %v402 = vsel %vm194, %v395, 0
    %404 = vmatprep.subr.mxu0 0.0
    %405 = vmatpush1.xpose.msra.mxu0 %v400
    %406 = vmatprep.subr.mxu0 0.0
    %407 = vmatpush1.xpose.msra.mxu0 %v402
    %408 = vmatprep.subr.mxu0 0.0
    %409 = vmatpush1.xpose.msra.mxu0 0.0
    %410 = vmatprep.subr.mxu0 0.0
    %411 = vmatpush1.xpose.msra.mxu0 0.0
    %412 = vmatprep.subr.mxu0 0.0
    %413 = vmatpush1.xpose.msra.mxu0 0.0
    %414 = vmatprep.subr.mxu0 0.0
    %415 = vmatpush1.xpose.msra.mxu0 0.0
    %416 = vmatprep.subr.mxu0 0.0
    %417 = vmatpush1.xpose.msra.mxu0 0.0
    %418 = vmatprep.subr.mxu0 0.0
    %419 = vmatpush1.xpose.msra.mxu0 0.0
    %420 = vmatprep.subr.mxu0 0.0
    %421 = vmatpush1.xpose.msra.mxu0 0.0
    %422 = vmatprep.subr.mxu0 0.0
    %423 = vmatpush1.xpose.msra.mxu0 0.0
    %424 = vmatprep.subr.mxu0 0.0
    %425 = vmatpush1.xpose.msra.mxu0 0.0
    %426 = vmatprep.subr.mxu0 0.0
    %427 = vmatpush1.xpose.msra.mxu0 0.0
    %428 = vmatprep.subr.mxu0 0.0
    %429 = vmatpush1.xpose.msra.mxu0 0.0
    %430 = vmatprep.subr.mxu0 0.0
    %431 = vmatpush1.xpose.msra.mxu0 0.0
    %432 = vmatprep.subr.mxu0 0.0
    %433 = vmatpush1.xpose.msra.mxu0 0.0
    %434 = vmatprep.subr.mxu0 0.0
    %435 = vmatpush1.xpose.msra.mxu0 0.0
    %436 = vmatprep.subr.mxu0 0.0
    %437 = vmatpush1.xpose.msra.mxu0 0.0
    %438 = vmatprep.subr.mxu0 0.0
    %439 = vmatpush1.xpose.msra.mxu0 0.0
    %440 = vmatprep.subr.mxu0 0.0
    %441 = vmatpush1.xpose.msra.mxu0 0.0
    %442 = vmatprep.subr.mxu0 0.0
    %443 = vmatpush1.xpose.msra.mxu0 0.0
    %444 = vmatprep.subr.mxu0 0.0
    %445 = vmatpush1.xpose.msra.mxu0 0.0
    %446 = vmatprep.subr.mxu0 0.0
    %447 = vmatpush1.xpose.msra.mxu0 0.0
    %448 = vmatprep.subr.mxu0 0.0
    %449 = vmatpush1.xpose.msra.mxu0 0.0
    %450 = vmatprep.subr.mxu0 0.0
    %451 = vmatpush1.xpose.msra.mxu0 0.0
    %452 = vmatprep.subr.mxu0 0.0
    %453 = vmatpush1.xpose.msra.mxu0 0.0
    %454 = vmatprep.subr.mxu0 0.0
    %455 = vmatpush1.xpose.msra.mxu0 0.0
    %456 = vmatprep.subr.mxu0 0.0
    %457 = vmatpush1.xpose.msra.mxu0 0.0
    %458 = vmatprep.subr.mxu0 0.0
    %459 = vmatpush1.xpose.msra.mxu0 0.0
    %460 = vmatprep.subr.mxu0 0.0
    %461 = vmatpush1.xpose.msra.mxu0 0.0
    %462 = vmatprep.subr.mxu0 0.0
    %463 = vmatpush1.xpose.msra.mxu0 0.0
    %464 = vmatprep.subr.mxu0 0.0
    %465 = vmatpush1.xpose.msra.mxu0 0.0
    %466 = vmatprep.subr.mxu0 0.0
    %467 = vmatpush1.xpose.msra.mxu0 0.0
    %468 = vmatprep.mubr.f32.mxu0 0.0
    %469 = vmatmul.mubr.f32.gmra.mrb[0].mxu0 %v396
    %v470 = vpop.f32.mrb[0].mxu0
    %v471 = vadd.f32 %v100, %v470
    %v472 = vpop.f32.mrb[0].mxu0
    %473 = vmatprep.mubr.f32.mxu0 0.0
    %474 = vmatmul.mubr.f32.gmra.mrb[0].mxu0 %v398
    %v475 = vpop.f32.mrb[0].mxu0
    %v476 = vadd.f32 %v101, %v475
    %v477 = vpop.f32.mrb[0].mxu0
    %478 = vdwg.mxu0
    %v479 = vsel %vm278, %v471, -inf
    %480 = vmax.xlane.f32.xlu0 %v479
    %v481 = vpop.xlane.xlu0 %480
    %v482 = vsel %vm278, %v476, -inf
    %483 = vmax.xlane.f32.xlu0 %v482
    %v484 = vpop.xlane.xlu0 %483
    %v485 = vsub.f32 %v471, %v481
    %v486 = vsub.f32 %v476, %v484
    %v487 = vmul.f32 %v485, 1.442695
    %v488 = vpow.pop %v487
    %v489 = vmul.f32 %v486, 1.442695
    %v490 = vpow.pop %v489
    %v491 = vsel %vm278, %v488, 0.0
    %492 = vadd.xlane.f32.xlu0 %v491
    %v493 = vpop.xlane.xlu0 %492
    %v494 = vsel %vm278, %v490, 0.0
    %495 = vadd.xlane.f32.xlu0 %v494
    %v496 = vpop.xlane.xlu0 %495
    %497 = vrot.lane.b32.xlu0 %v180, 56
    %v498 = vpop.permute.xlu0 %497
    %499 = vrot.lane.b32.xlu0 %v185, 56
    %v500 = vpop.permute.xlu0 %499
    %v504 = vsel %vm278, %v488, 0
    %v507 = vsel %vm278, %v490, 0
    %509 = vmatprep.subr.mxu0 0.0
    %510 = vmatpush1.msra.mxu0 %v498
    %511 = vmatprep.subr.mxu0 0.0
    %512 = vmatpush1.msra.mxu0 %v500
    %513 = vmatprep.subr.mxu0 0.0
    %514 = vmatpush1.msra.mxu0 0.0
    %515 = vmatprep.subr.mxu0 0.0
    %516 = vmatpush1.msra.mxu0 0.0
    %517 = vmatprep.subr.mxu0 0.0
    %518 = vmatpush1.msra.mxu0 0.0
    %519 = vmatprep.subr.mxu0 0.0
    %520 = vmatpush1.msra.mxu0 0.0
    %521 = vmatprep.subr.mxu0 0.0
    %522 = vmatpush1.msra.mxu0 0.0
    %523 = vmatprep.subr.mxu0 0.0
    %524 = vmatpush1.msra.mxu0 0.0
    %525 = vmatprep.subr.mxu0 0.0
    %526 = vmatpush1.msra.mxu0 0.0
    %527 = vmatprep.subr.mxu0 0.0
    %528 = vmatpush1.msra.mxu0 0.0
    %529 = vmatprep.subr.mxu0 0.0
    %530 = vmatpush1.msra.mxu0 0.0
    %531 = vmatprep.subr.mxu0 0.0
    %532 = vmatpush1.msra.mxu0 0.0
    %533 = vmatprep.subr.mxu0 0.0
    %534 = vmatpush1.msra.mxu0 0.0
    %535 = vmatprep.subr.mxu0 0.0
    %536 = vmatpush1.msra.mxu0 0.0
    %537 = vmatprep.subr.mxu0 0.0
    %538 = vmatpush1.msra.mxu0 0.0
    %539 = vmatprep.subr.mxu0 0.0
    %540 = vmatpush1.msra.mxu0 0.0
    %541 = vmatprep.subr.mxu0 0.0
    %542 = vmatpush1.msra.mxu0 0.0
    %543 = vmatprep.subr.mxu0 0.0
    %544 = vmatpush1.msra.mxu0 0.0
    %545 = vmatprep.subr.mxu0 0.0
    %546 = vmatpush1.msra.mxu0 0.0
    %547 = vmatprep.subr.mxu0 0.0
    %548 = vmatpush1.msra.mxu0 0.0
    %549 = vmatprep.subr.mxu0 0.0
    %550 = vmatpush1.msra.mxu0 0.0
    %551 = vmatprep.subr.mxu0 0.0
    %552 = vmatpush1.msra.mxu0 0.0
    %553 = vmatprep.subr.mxu0 0.0
    %554 = vmatpush1.msra.mxu0 0.0
    %555 = vmatprep.subr.mxu0 0.0
    %556 = vmatpush1.msra.mxu0 0.0
    %557 = vmatprep.subr.mxu0 0.0
    %558 = vmatpush1.msra.mxu0 0.0
    %559 = vmatprep.subr.mxu0 0.0
    %560 = vmatpush1.msra.mxu0 0.0
    %561 = vmatprep.subr.mxu0 0.0
    %562 = vmatpush1.msra.mxu0 0.0
    %563 = vmatprep.subr.mxu0 0.0
    %564 = vmatpush1.msra.mxu0 0.0
    %565 = vmatprep.subr.mxu0 0.0
    %566 = vmatpush1.msra.mxu0 0.0
    %567 = vmatprep.subr.mxu0 0.0
    %568 = vmatpush1.msra.mxu0 0.0
    %569 = vmatprep.subr.mxu0 0.0
    %570 = vmatpush1.msra.mxu0 0.0
    %571 = vmatprep.subr.mxu0 0.0
    %572 = vmatpush1.msra.mxu0 0.0
    %573 = vmatprep.mubr.f32.mxu0 0.0
    %574 = vmatmul.mubr.f32.gmra.mrb[0].mxu0 %v504
    %v575 = vpop.f32.mrb[0].mxu0
    %v576 = vadd.f32 0.0, %v575
    %v577 = vpop.f32.mrb[0].mxu0
    %578 = vmatprep.mubr.f32.mxu0 0.0
    %579 = vmatmul.mubr.f32.gmra.mrb[0].mxu0 %v507
    %v580 = vpop.f32.mrb[0].mxu0
    %v581 = vadd.f32 0.0, %v580
    %v582 = vpop.f32.mrb[0].mxu0
    %583 = vdwg.mxu0
    %v584 = vrcp.pop %v493
    %v585 = vmul.f32 %v576, %v584
    %v586 = vrcp.pop %v496
    %v587 = vmul.f32 %v581, %v586
    %588 = vrot.lane.b32.xlu0 %v180, 112
    %v589 = vpop.permute.xlu0 %588
    %590 = vrot.lane.b32.xlu0 %v185, 112
    %v591 = vpop.permute.xlu0 %590
    %592 = vrot.lane.b32.xlu0 %v180, 80
    %v593 = vpop.permute.xlu0 %592
    %594 = vrot.lane.b32.xlu0 %v185, 80
    %v595 = vpop.permute.xlu0 %594
    %v596 = vsel %vm194, %v589, 0
    %v598 = vsel %vm194, %v591, 0
    %v600 = vsel %vm194, %v593, 0
    %v602 = vsel %vm194, %v595, 0
    %604 = vmatprep.subr.mxu0 0.0
    %605 = vmatpush1.xpose.msra.mxu0 %v600
    %606 = vmatprep.subr.mxu0 0.0
    %607 = vmatpush1.xpose.msra.mxu0 %v602
    %608 = vmatprep.subr.mxu0 0.0
    %609 = vmatpush1.xpose.msra.mxu0 0.0
    %610 = vmatprep.subr.mxu0 0.0
    %611 = vmatpush1.xpose.msra.mxu0 0.0
    %612 = vmatprep.subr.mxu0 0.0
    %613 = vmatpush1.xpose.msra.mxu0 0.0
    %614 = vmatprep.subr.mxu0 0.0
    %615 = vmatpush1.xpose.msra.mxu0 0.0
    %616 = vmatprep.subr.mxu0 0.0
    %617 = vmatpush1.xpose.msra.mxu0 0.0
    %618 = vmatprep.subr.mxu0 0.0
    %619 = vmatpush1.xpose.msra.mxu0 0.0
    %620 = vmatprep.subr.mxu0 0.0
    %621 = vmatpush1.xpose.msra.mxu0 0.0
    %622 = vmatprep.subr.mxu0 0.0
    %623 = vmatpush1.xpose.msra.mxu0 0.0
    %624 = vmatprep.subr.mxu0 0.0
    %625 = vmatpush1.xpose.msra.mxu0 0.0
    %626 = vmatprep.subr.mxu0 0.0
    %627 = vmatpush1.xpose.msra.mxu0 0.0
    %628 = vmatprep.subr.mxu0 0.0
    %629 = vmatpush1.xpose.msra.mxu0 0.0
    %630 = vmatprep.subr.mxu0 0.0
    %631 = vmatpush1.xpose.msra.mxu0 0.0
    %632 = vmatprep.subr.mxu0 0.0
    %633 = vmatpush1.xpose.msra.mxu0 0.0
    %634 = vmatprep.subr.mxu0 0.0
    %635 = vmatpush1.xpose.msra.mxu0 0.0
    %636 = vmatprep.subr.mxu0 0.0
    %637 = vmatpush1.xpose.msra.mxu0 0.0
    %638 = vmatprep.subr.mxu0 0.0
    %639 = vmatpush1.xpose.msra.mxu0 0.0
    %640 = vmatprep.subr.mxu0 0.0
    %641 = vmatpush1.xpose.msra.mxu0 0.0
    %642 = vmatprep.subr.mxu0 0.0
    %643 = vmatpush1.xpose.msra.mxu0 0.0
    %644 = vmatprep.subr.mxu0 0.0
    %645 = vmatpush1.xpose.msra.mxu0 0.0
    %646 = vmatprep.subr.mxu0 0.0
    %647 = vmatpush1.xpose.msra.mxu0 0.0
    %648 = vmatprep.subr.mxu0 0.0
    %649 = vmatpush1.xpose.msra.mxu0 0.0
    %650 = vmatprep.subr.mxu0 0.0
    %651 = vmatpush1.xpose.msra.mxu0 0.0
    %652 = vmatprep.subr.mxu0 0.0
    %653 = vmatpush1.xpose.msra.mxu0 0.0
    %654 = vmatprep.subr.mxu0 0.0
    %655 = vmatpush1.xpose.msra.mxu0 0.0
    %656 = vmatprep.subr.mxu0 0.0
    %657 = vmatpush1.xpose.msra.mxu0 0.0
    %658 = vmatprep.subr.mxu0 0.0
    %659 = vmatpush1.xpose.msra.mxu0 0.0
    %660 = vmatprep.subr.mxu0 0.0
    %661 = vmatpush1.xpose.msra.mxu0 0.0
    %662 = vmatprep.subr.mxu0 0.0
    %663 = vmatpush1.xpose.msra.mxu0 0.0
    %664 = vmatprep.subr.mxu0 0.0
    %665 = vmatpush1.xpose.msra.mxu0 0.0
    %666 = vmatprep.subr.mxu0 0.0
    %667 = vmatpush1.xpose.msra.mxu0 0.0
    %668 = vmatprep.mubr.f32.mxu0 0.0
    %669 = vmatmul.mubr.f32.gmra.mrb[0].mxu0 %v596
    %v670 = vpop.f32.mrb[0].mxu0
    %v671 = vadd.f32 %v100, %v670
    %v672 = vpop.f32.mrb[0].mxu0
    %673 = vmatprep.mubr.f32.mxu0 0.0
    %674 = vmatmul.mubr.f32.gmra.mrb[0].mxu0 %v598
    %v675 = vpop.f32.mrb[0].mxu0
    %v676 = vadd.f32 %v101, %v675
    %v677 = vpop.f32.mrb[0].mxu0
    %678 = vdwg.mxu0
    %v679 = vsel %vm278, %v671, -inf
    %680 = vmax.xlane.f32.xlu0 %v679
    %v681 = vpop.xlane.xlu0 %680
    %v682 = vsel %vm278, %v676, -inf
    %683 = vmax.xlane.f32.xlu0 %v682
    %v684 = vpop.xlane.xlu0 %683
    %v685 = vsub.f32 %v671, %v681
    %v686 = vsub.f32 %v676, %v684
    %v687 = vmul.f32 %v685, 1.442695
    %v688 = vpow.pop %v687
    %v689 = vmul.f32 %v686, 1.442695
    %v690 = vpow.pop %v689
    %v691 = vsel %vm278, %v688, 0.0
    %692 = vadd.xlane.f32.xlu0 %v691
    %v693 = vpop.xlane.xlu0 %692
    %v694 = vsel %vm278, %v690, 0.0
    %695 = vadd.xlane.f32.xlu0 %v694
    %v696 = vpop.xlane.xlu0 %695
    %697 = vrot.lane.b32.xlu0 %v180, 48
    %v698 = vpop.permute.xlu0 %697
    %699 = vrot.lane.b32.xlu0 %v185, 48
    %v700 = vpop.permute.xlu0 %699
    %v704 = vsel %vm278, %v688, 0
    %v707 = vsel %vm278, %v690, 0
    %709 = vmatprep.subr.mxu0 0.0
    %710 = vmatpush1.msra.mxu0 %v698
    %711 = vmatprep.subr.mxu0 0.0
    %712 = vmatpush1.msra.mxu0 %v700
    %713 = vmatprep.subr.mxu0 0.0
    %714 = vmatpush1.msra.mxu0 0.0
    %715 = vmatprep.subr.mxu0 0.0
    %716 = vmatpush1.msra.mxu0 0.0
    %717 = vmatprep.subr.mxu0 0.0
    %718 = vmatpush1.msra.mxu0 0.0
    %719 = vmatprep.subr.mxu0 0.0
    %720 = vmatpush1.msra.mxu0 0.0
    %721 = vmatprep.subr.mxu0 0.0
    %722 = vmatpush1.msra.mxu0 0.0
    %723 = vmatprep.subr.mxu0 0.0
    %724 = vmatpush1.msra.mxu0 0.0
    %725 = vmatprep.subr.mxu0 0.0
    %726 = vmatpush1.msra.mxu0 0.0
    %727 = vmatprep.subr.mxu0 0.0
    %728 = vmatpush1.msra.mxu0 0.0
    %729 = vmatprep.subr.mxu0 0.0
    %730 = vmatpush1.msra.mxu0 0.0
    %731 = vmatprep.subr.mxu0 0.0
    %732 = vmatpush1.msra.mxu0 0.0
    %733 = vmatprep.subr.mxu0 0.0
    %734 = vmatpush1.msra.mxu0 0.0
    %735 = vmatprep.subr.mxu0 0.0
    %736 = vmatpush1.msra.mxu0 0.0
    %737 = vmatprep.subr.mxu0 0.0
    %738 = vmatpush1.msra.mxu0 0.0
    %739 = vmatprep.subr.mxu0 0.0
    %740 = vmatpush1.msra.mxu0 0.0
    %741 = vmatprep.subr.mxu0 0.0
    %742 = vmatpush1.msra.mxu0 0.0
    %743 = vmatprep.subr.mxu0 0.0
    %744 = vmatpush1.msra.mxu0 0.0
    %745 = vmatprep.subr.mxu0 0.0
    %746 = vmatpush1.msra.mxu0 0.0
    %747 = vmatprep.subr.mxu0 0.0
    %748 = vmatpush1.msra.mxu0 0.0
    %749 = vmatprep.subr.mxu0 0.0
    %750 = vmatpush1.msra.mxu0 0.0
    %751 = vmatprep.subr.mxu0 0.0
    %752 = vmatpush1.msra.mxu0 0.0
    %753 = vmatprep.subr.mxu0 0.0
    %754 = vmatpush1.msra.mxu0 0.0
    %755 = vmatprep.subr.mxu0 0.0
    %756 = vmatpush1.msra.mxu0 0.0
    %757 = vmatprep.subr.mxu0 0.0
    %758 = vmatpush1.msra.mxu0 0.0
    %759 = vmatprep.subr.mxu0 0.0
    %760 = vmatpush1.msra.mxu0 0.0
    %761 = vmatprep.subr.mxu0 0.0
    %762 = vmatpush1.msra.mxu0 0.0
    %763 = vmatprep.subr.mxu0 0.0
    %764 = vmatpush1.msra.mxu0 0.0
    %765 = vmatprep.subr.mxu0 0.0
    %766 = vmatpush1.msra.mxu0 0.0
    %767 = vmatprep.subr.mxu0 0.0
    %768 = vmatpush1.msra.mxu0 0.0
    %769 = vmatprep.subr.mxu0 0.0
    %770 = vmatpush1.msra.mxu0 0.0
    %771 = vmatprep.subr.mxu0 0.0
    %772 = vmatpush1.msra.mxu0 0.0
    %773 = vmatprep.mubr.f32.mxu0 0.0
    %774 = vmatmul.mubr.f32.gmra.mrb[0].mxu0 %v704
    %v775 = vpop.f32.mrb[0].mxu0
    %v776 = vadd.f32 0.0, %v775
    %v777 = vpop.f32.mrb[0].mxu0
    %778 = vmatprep.mubr.f32.mxu0 0.0
    %779 = vmatmul.mubr.f32.gmra.mrb[0].mxu0 %v707
    %v780 = vpop.f32.mrb[0].mxu0
    %v781 = vadd.f32 0.0, %v780
    %v782 = vpop.f32.mrb[0].mxu0
    %783 = vdwg.mxu0
    %v784 = vrcp.pop %v693
    %v785 = vmul.f32 %v776, %v784
    %v786 = vrcp.pop %v696
    %v787 = vmul.f32 %v781, %v786
    %788 = vrot.lane.b32.xlu0 %v180, 104
    %v789 = vpop.permute.xlu0 %788
    %790 = vrot.lane.b32.xlu0 %v185, 104
    %v791 = vpop.permute.xlu0 %790
    %792 = vrot.lane.b32.xlu0 %v180, 72
    %v793 = vpop.permute.xlu0 %792
    %794 = vrot.lane.b32.xlu0 %v185, 72
    %v795 = vpop.permute.xlu0 %794
    %v796 = vsel %vm194, %v789, 0
    %v798 = vsel %vm194, %v791, 0
    %v800 = vsel %vm194, %v793, 0
    %v802 = vsel %vm194, %v795, 0
    %804 = vmatprep.subr.mxu0 0.0
    %805 = vmatpush1.xpose.msra.mxu0 %v800
    %806 = vmatprep.subr.mxu0 0.0
    %807 = vmatpush1.xpose.msra.mxu0 %v802
    %808 = vmatprep.subr.mxu0 0.0
    %809 = vmatpush1.xpose.msra.mxu0 0.0
    %810 = vmatprep.subr.mxu0 0.0
    %811 = vmatpush1.xpose.msra.mxu0 0.0
    %812 = vmatprep.subr.mxu0 0.0
    %813 = vmatpush1.xpose.msra.mxu0 0.0
    %814 = vmatprep.subr.mxu0 0.0
    %815 = vmatpush1.xpose.msra.mxu0 0.0
    %816 = vmatprep.subr.mxu0 0.0
    %817 = vmatpush1.xpose.msra.mxu0 0.0
    %818 = vmatprep.subr.mxu0 0.0
    %819 = vmatpush1.xpose.msra.mxu0 0.0
    %820 = vmatprep.subr.mxu0 0.0
    %821 = vmatpush1.xpose.msra.mxu0 0.0
    %822 = vmatprep.subr.mxu0 0.0
    %823 = vmatpush1.xpose.msra.mxu0 0.0
    %824 = vmatprep.subr.mxu0 0.0
    %825 = vmatpush1.xpose.msra.mxu0 0.0
    %826 = vmatprep.subr.mxu0 0.0
    %827 = vmatpush1.xpose.msra.mxu0 0.0
    %828 = vmatprep.subr.mxu0 0.0
    %829 = vmatpush1.xpose.msra.mxu0 0.0
    %830 = vmatprep.subr.mxu0 0.0
    %831 = vmatpush1.xpose.msra.mxu0 0.0
    %832 = vmatprep.subr.mxu0 0.0
    %833 = vmatpush1.xpose.msra.mxu0 0.0
    %834 = vmatprep.subr.mxu0 0.0
    %835 = vmatpush1.xpose.msra.mxu0 0.0
    %836 = vmatprep.subr.mxu0 0.0
    %837 = vmatpush1.xpose.msra.mxu0 0.0
    %838 = vmatprep.subr.mxu0 0.0
    %839 = vmatpush1.xpose.msra.mxu0 0.0
    %840 = vmatprep.subr.mxu0 0.0
    %841 = vmatpush1.xpose.msra.mxu0 0.0
    %842 = vmatprep.subr.mxu0 0.0
    %843 = vmatpush1.xpose.msra.mxu0 0.0
    %844 = vmatprep.subr.mxu0 0.0
    %845 = vmatpush1.xpose.msra.mxu0 0.0
    %846 = vmatprep.subr.mxu0 0.0
    %847 = vmatpush1.xpose.msra.mxu0 0.0
    %848 = vmatprep.subr.mxu0 0.0
    %849 = vmatpush1.xpose.msra.mxu0 0.0
    %850 = vmatprep.subr.mxu0 0.0
    %851 = vmatpush1.xpose.msra.mxu0 0.0
    %852 = vmatprep.subr.mxu0 0.0
    %853 = vmatpush1.xpose.msra.mxu0 0.0
    %854 = vmatprep.subr.mxu0 0.0
    %855 = vmatpush1.xpose.msra.mxu0 0.0
    %856 = vmatprep.subr.mxu0 0.0
    %857 = vmatpush1.xpose.msra.mxu0 0.0
    %858 = vmatprep.subr.mxu0 0.0
    %859 = vmatpush1.xpose.msra.mxu0 0.0
    %860 = vmatprep.subr.mxu0 0.0
    %861 = vmatpush1.xpose.msra.mxu0 0.0
    %862 = vmatprep.subr.mxu0 0.0
    %863 = vmatpush1.xpose.msra.mxu0 0.0
    %864 = vmatprep.subr.mxu0 0.0
    %865 = vmatpush1.xpose.msra.mxu0 0.0
    %866 = vmatprep.subr.mxu0 0.0
    %867 = vmatpush1.xpose.msra.mxu0 0.0
    %868 = vmatprep.mubr.f32.mxu0 0.0
    %869 = vmatmul.mubr.f32.gmra.mrb[0].mxu0 %v796
    %v870 = vpop.f32.mrb[0].mxu0
    %v871 = vadd.f32 %v100, %v870
    %v872 = vpop.f32.mrb[0].mxu0
    %873 = vmatprep.mubr.f32.mxu0 0.0
    %874 = vmatmul.mubr.f32.gmra.mrb[0].mxu0 %v798
    %v875 = vpop.f32.mrb[0].mxu0
    %v876 = vadd.f32 %v101, %v875
    %v877 = vpop.f32.mrb[0].mxu0
    %878 = vdwg.mxu0
    %v879 = vsel %vm278, %v871, -inf
    %880 = vmax.xlane.f32.xlu0 %v879
    %v881 = vpop.xlane.xlu0 %880
    %v882 = vsel %vm278, %v876, -inf
    %883 = vmax.xlane.f32.xlu0 %v882
    %v884 = vpop.xlane.xlu0 %883
    %v885 = vsub.f32 %v871, %v881
    %v886 = vsub.f32 %v876, %v884
    %v887 = vmul.f32 %v885, 1.442695
    %v888 = vpow.pop %v887
    %v889 = vmul.f32 %v886, 1.442695
    %v890 = vpow.pop %v889
    %v891 = vsel %vm278, %v888, 0.0
    %892 = vadd.xlane.f32.xlu0 %v891
    %v893 = vpop.xlane.xlu0 %892
    %v894 = vsel %vm278, %v890, 0.0
    %895 = vadd.xlane.f32.xlu0 %v894
    %v896 = vpop.xlane.xlu0 %895
    %897 = vrot.lane.b32.xlu0 %v180, 40
    %v898 = vpop.permute.xlu0 %897
    %899 = vrot.lane.b32.xlu0 %v185, 40
    %v900 = vpop.permute.xlu0 %899
    %v904 = vsel %vm278, %v888, 0
    %v907 = vsel %vm278, %v890, 0
    %909 = vmatprep.subr.mxu0 0.0
    %910 = vmatpush1.msra.mxu0 %v898
    %911 = vmatprep.subr.mxu0 0.0
    %912 = vmatpush1.msra.mxu0 %v900
    %913 = vmatprep.subr.mxu0 0.0
    %914 = vmatpush1.msra.mxu0 0.0
    %915 = vmatprep.subr.mxu0 0.0
    %916 = vmatpush1.msra.mxu0 0.0
    %917 = vmatprep.subr.mxu0 0.0
    %918 = vmatpush1.msra.mxu0 0.0
    %919 = vmatprep.subr.mxu0 0.0
    %920 = vmatpush1.msra.mxu0 0.0
    %921 = vmatprep.subr.mxu0 0.0
    %922 = vmatpush1.msra.mxu0 0.0
    %923 = vmatprep.subr.mxu0 0.0
    %924 = vmatpush1.msra.mxu0 0.0
    %925 = vmatprep.subr.mxu0 0.0
    %926 = vmatpush1.msra.mxu0 0.0
    %927 = vmatprep.subr.mxu0 0.0
    %928 = vmatpush1.msra.mxu0 0.0
    %929 = vmatprep.subr.mxu0 0.0
    %930 = vmatpush1.msra.mxu0 0.0
    %931 = vmatprep.subr.mxu0 0.0
    %932 = vmatpush1.msra.mxu0 0.0
    %933 = vmatprep.subr.mxu0 0.0
    %934 = vmatpush1.msra.mxu0 0.0
    %935 = vmatprep.subr.mxu0 0.0
    %936 = vmatpush1.msra.mxu0 0.0
    %937 = vmatprep.subr.mxu0 0.0
    %938 = vmatpush1.msra.mxu0 0.0
    %939 = vmatprep.subr.mxu0 0.0
    %940 = vmatpush1.msra.mxu0 0.0
    %941 = vmatprep.subr.mxu0 0.0
    %942 = vmatpush1.msra.mxu0 0.0
    %943 = vmatprep.subr.mxu0 0.0
    %944 = vmatpush1.msra.mxu0 0.0
    %945 = vmatprep.subr.mxu0 0.0
    %946 = vmatpush1.msra.mxu0 0.0
    %947 = vmatprep.subr.mxu0 0.0
    %948 = vmatpush1.msra.mxu0 0.0
    %949 = vmatprep.subr.mxu0 0.0
    %950 = vmatpush1.msra.mxu0 0.0
    %951 = vmatprep.subr.mxu0 0.0
    %952 = vmatpush1.msra.mxu0 0.0
    %953 = vmatprep.subr.mxu0 0.0
    %954 = vmatpush1.msra.mxu0 0.0
    %955 = vmatprep.subr.mxu0 0.0
    %956 = vmatpush1.msra.mxu0 0.0
    %957 = vmatprep.subr.mxu0 0.0
    %958 = vmatpush1.msra.mxu0 0.0
    %959 = vmatprep.subr.mxu0 0.0
    %960 = vmatpush1.msra.mxu0 0.0
    %961 = vmatprep.subr.mxu0 0.0
    %962 = vmatpush1.msra.mxu0 0.0
    %963 = vmatprep.subr.mxu0 0.0
    %964 = vmatpush1.msra.mxu0 0.0
    %965 = vmatprep.subr.mxu0 0.0
    %966 = vmatpush1.msra.mxu0 0.0
    %967 = vmatprep.subr.mxu0 0.0
    %968 = vmatpush1.msra.mxu0 0.0
    %969 = vmatprep.subr.mxu0 0.0
    %970 = vmatpush1.msra.mxu0 0.0
    %971 = vmatprep.subr.mxu0 0.0
    %972 = vmatpush1.msra.mxu0 0.0
    %973 = vmatprep.mubr.f32.mxu0 0.0
    %974 = vmatmul.mubr.f32.gmra.mrb[0].mxu0 %v904
    %v975 = vpop.f32.mrb[0].mxu0
    %v976 = vadd.f32 0.0, %v975
    %v977 = vpop.f32.mrb[0].mxu0
    %978 = vmatprep.mubr.f32.mxu0 0.0
    %979 = vmatmul.mubr.f32.gmra.mrb[0].mxu0 %v907
    %v980 = vpop.f32.mrb[0].mxu0
    %v981 = vadd.f32 0.0, %v980
    %v982 = vpop.f32.mrb[0].mxu0
    %983 = vdwg.mxu0
    %v984 = vrcp.pop %v893
    %v985 = vmul.f32 %v976, %v984
    %v986 = vrcp.pop %v896
    %v987 = vmul.f32 %v981, %v986
    %990 = vrot.lane.b32.xlu0 %v585, 8
    %v991 = vpop.permute.xlu0 %990
    %992 = vrot.lane.b32.xlu0 %v587, 8
    %v993 = vpop.permute.xlu0 %992
    %998 = vrot.lane.b32.xlu0 %v785, 16
    %v999 = vpop.permute.xlu0 %998
    %1000 = vrot.lane.b32.xlu0 %v787, 16
    %v1001 = vpop.permute.xlu0 %1000
    %1006 = vrot.lane.b32.xlu0 %v985, 24
    %v1007 = vpop.permute.xlu0 %1006
    %1008 = vrot.lane.b32.xlu0 %v987, 24
    %v1009 = vpop.permute.xlu0 %1008
    %v1012 = vsel %vm194, %v385, %v991
    %v1013 = vsel %vm194, %v387, %v993
    %v1014 = vsel %vm278, %v1012, %v999
    %v1015 = vsel %vm278, %v1013, %v1001
    %vm1016 = vcmask 195584
    %v1017 = vsel %vm1016, %v1014, %v1007
    %v1018 = vsel %vm1016, %v1015, %v1009
    %v1020 = vsel %vm106, %v1017, 0
    %v1023 = vsel %vm106, %v1018, 0
    %1025 = vmatprep.subr.mxu0 0.0
    %1026 = vmatpush1.msra.mxu0 %v46
    %1027 = vmatprep.subr.mxu0 0.0
    %1028 = vmatpush1.msra.mxu0 %v47
    %1029 = vmatprep.subr.mxu0 0.0
    %1030 = vmatpush1.msra.mxu0 %v48
    %1031 = vmatprep.subr.mxu0 0.0
    %1032 = vmatpush1.msra.mxu0 %v49
    %1033 = vmatprep.subr.mxu0 0.0
    %1034 = vmatpush1.msra.mxu0 0.0
    %1035 = vmatprep.subr.mxu0 0.0
    %1036 = vmatpush1.msra.mxu0 0.0
    %1037 = vmatprep.subr.mxu0 0.0
    %1038 = vmatpush1.msra.mxu0 0.0
    %1039 = vmatprep.subr.mxu0 0.0
    %1040 = vmatpush1.msra.mxu0 0.0
    %1041 = vmatprep.subr.mxu0 0.0
    %1042 = vmatpush1.msra.mxu0 0.0
    %1043 = vmatprep.subr.mxu0 0.0
    %1044 = vmatpush1.msra.mxu0 0.0
    %1045 = vmatprep.subr.mxu0 0.0
    %1046 = vmatpush1.msra.mxu0 0.0
    %1047 = vmatprep.subr.mxu0 0.0
    %1048 = vmatpush1.msra.mxu0 0.0
    %1049 = vmatprep.subr.mxu0 0.0
    %1050 = vmatpush1.msra.mxu0 0.0
    %1051 = vmatprep.subr.mxu0 0.0
    %1052 = vmatpush1.msra.mxu0 0.0
    %1053 = vmatprep.subr.mxu0 0.0
    %1054 = vmatpush1.msra.mxu0 0.0
    %1055 = vmatprep.subr.mxu0 0.0
    %1056 = vmatpush1.msra.mxu0 0.0
    %1057 = vmatprep.subr.mxu0 0.0
    %1058 = vmatpush1.msra.mxu0 0.0
    %1059 = vmatprep.subr.mxu0 0.0
    %1060 = vmatpush1.msra.mxu0 0.0
    %1061 = vmatprep.subr.mxu0 0.0
    %1062 = vmatpush1.msra.mxu0 0.0
    %1063 = vmatprep.subr.mxu0 0.0
    %1064 = vmatpush1.msra.mxu0 0.0
    %1065 = vmatprep.subr.mxu0 0.0
    %1066 = vmatpush1.msra.mxu0 0.0
    %1067 = vmatprep.subr.mxu0 0.0
    %1068 = vmatpush1.msra.mxu0 0.0
    %1069 = vmatprep.subr.mxu0 0.0
    %1070 = vmatpush1.msra.mxu0 0.0
    %1071 = vmatprep.subr.mxu0 0.0
    %1072 = vmatpush1.msra.mxu0 0.0
    %1073 = vmatprep.subr.mxu0 0.0
    %1074 = vmatpush1.msra.mxu0 0.0
    %1075 = vmatprep.subr.mxu0 0.0
    %1076 = vmatpush1.msra.mxu0 0.0
    %1077 = vmatprep.subr.mxu0 0.0
    %1078 = vmatpush1.msra.mxu0 0.0
    %1079 = vmatprep.subr.mxu0 0.0
    %1080 = vmatpush1.msra.mxu0 0.0
    %1081 = vmatprep.subr.mxu0 0.0
    %1082 = vmatpush1.msra.mxu0 0.0
    %1083 = vmatprep.subr.mxu0 0.0
    %1084 = vmatpush1.msra.mxu0 0.0
    %1085 = vmatprep.subr.mxu0 0.0
    %1086 = vmatpush1.msra.mxu0 0.0
    %1087 = vmatprep.subr.mxu0 0.0
    %1088 = vmatpush1.msra.mxu0 0.0
    %1089 = vmatprep.mubr.f32.mxu0 0.0
    %1090 = vmatmul.mubr.f32.gmra.mrb[0].mxu0 %v1020
    %v1091 = vpop.f32.mrb[0].mxu0
    %v1092 = vadd.f32 0.0, %v1091
    %v1093 = vpop.f32.mrb[0].mxu0
    %1094 = vmatprep.mubr.f32.mxu0 0.0
    %1095 = vmatmul.mubr.f32.gmra.mrb[0].mxu0 %v1023
    %v1096 = vpop.f32.mrb[0].mxu0
    %v1097 = vadd.f32 0.0, %v1096
    %v1098 = vpop.f32.mrb[0].mxu0
    %1099 = vdwg.mxu0
    %v1100 = vadd.f32 %v40, %v1092
    %v1101 = vadd.f32 %v41, %v1097
    %v1102 = vlaneseq
    %v1103 = vshrl.u32 %v1102, 7
    %v1104 = vsub.s32 0, %v1103
    %v1105 = vrot.slane %v55, %v1104
    %v1106 = vadd.f32 %v1100, %v1105
    %v1107 = vadd.f32 %v1101, %v1105
    %v1108 = vlaneseq
    %v1109 = vshrl.u32 %v1108, 7
    %v1110 = vsub.s32 0, %v1109
    %v1111 = vrot.slane %v56, %v1110
    %v1113 = vsel %vm106, %v1106, 0
    %v1116 = vsel %vm106, %v1107, 0
    %1118 = vmatprep.subr.mxu0 0.0
    %1119 = vmatpush1.msra.mxu0 %v50
    %1120 = vmatprep.subr.mxu0 0.0
    %1121 = vmatpush1.msra.mxu0 %v51
    %1122 = vmatprep.subr.mxu0 0.0
    %1123 = vmatpush1.msra.mxu0 %v52
    %1124 = vmatprep.subr.mxu0 0.0
    %1125 = vmatpush1.msra.mxu0 %v53
    %1126 = vmatprep.subr.mxu0 0.0
    %1127 = vmatpush1.msra.mxu0 0.0
    %1128 = vmatprep.subr.mxu0 0.0
    %1129 = vmatpush1.msra.mxu0 0.0
    %1130 = vmatprep.subr.mxu0 0.0
    %1131 = vmatpush1.msra.mxu0 0.0
    %1132 = vmatprep.subr.mxu0 0.0
    %1133 = vmatpush1.msra.mxu0 0.0
    %1134 = vmatprep.subr.mxu0 0.0
    %1135 = vmatpush1.msra.mxu0 0.0
    %1136 = vmatprep.subr.mxu0 0.0
    %1137 = vmatpush1.msra.mxu0 0.0
    %1138 = vmatprep.subr.mxu0 0.0
    %1139 = vmatpush1.msra.mxu0 0.0
    %1140 = vmatprep.subr.mxu0 0.0
    %1141 = vmatpush1.msra.mxu0 0.0
    %1142 = vmatprep.subr.mxu0 0.0
    %1143 = vmatpush1.msra.mxu0 0.0
    %1144 = vmatprep.subr.mxu0 0.0
    %1145 = vmatpush1.msra.mxu0 0.0
    %1146 = vmatprep.subr.mxu0 0.0
    %1147 = vmatpush1.msra.mxu0 0.0
    %1148 = vmatprep.subr.mxu0 0.0
    %1149 = vmatpush1.msra.mxu0 0.0
    %1150 = vmatprep.subr.mxu0 0.0
    %1151 = vmatpush1.msra.mxu0 0.0
    %1152 = vmatprep.subr.mxu0 0.0
    %1153 = vmatpush1.msra.mxu0 0.0
    %1154 = vmatprep.subr.mxu0 0.0
    %1155 = vmatpush1.msra.mxu0 0.0
    %1156 = vmatprep.subr.mxu0 0.0
    %1157 = vmatpush1.msra.mxu0 0.0
    %1158 = vmatprep.subr.mxu0 0.0
    %1159 = vmatpush1.msra.mxu0 0.0
    %1160 = vmatprep.subr.mxu0 0.0
    %1161 = vmatpush1.msra.mxu0 0.0
    %1162 = vmatprep.subr.mxu0 0.0
    %1163 = vmatpush1.msra.mxu0 0.0
    %1164 = vmatprep.subr.mxu0 0.0
    %1165 = vmatpush1.msra.mxu0 0.0
    %1166 = vmatprep.subr.mxu0 0.0
    %1167 = vmatpush1.msra.mxu0 0.0
    %1168 = vmatprep.subr.mxu0 0.0
    %1169 = vmatpush1.msra.mxu0 0.0
    %1170 = vmatprep.subr.mxu0 0.0
    %1171 = vmatpush1.msra.mxu0 0.0
    %1172 = vmatprep.subr.mxu0 0.0
    %1173 = vmatpush1.msra.mxu0 0.0
    %1174 = vmatprep.subr.mxu0 0.0
    %1175 = vmatpush1.msra.mxu0 0.0
    %1176 = vmatprep.subr.mxu0 0.0
    %1177 = vmatpush1.msra.mxu0 0.0
    %1178 = vmatprep.subr.mxu0 0.0
    %1179 = vmatpush1.msra.mxu0 0.0
    %1180 = vmatprep.subr.mxu0 0.0
    %1181 = vmatpush1.msra.mxu0 0.0
    %1182 = vmatprep.mubr.f32.mxu0 0.0
    %1183 = vmatmul.mubr.f32.gmra.mrb[0].mxu0 %v1113
    %v1184 = vpop.f32.mrb[0].mxu0
    %v1185 = vadd.f32 %v1111, %v1184
    %v1186 = vpop.f32.mrb[0].mxu0
    %1187 = vmatprep.mubr.f32.mxu0 0.0
    %1188 = vmatmul.mubr.f32.gmra.mrb[0].mxu0 %v1116
    %v1189 = vpop.f32.mrb[0].mxu0
    %v1190 = vadd.f32 %v1111, %v1189
    %v1191 = vpop.f32.mrb[0].mxu0
    %1192 = vdwg.mxu0
    %1193 = vst.msk [vmem:[#allocation7] sm:$0xff] %vm106, %v1185
    %1194 = vst.msk [vmem:[#allocation7 + $0x8] sm:$0xff] %vm106, %v1190
    // Predicated region
    $region18: #{transformer_encoder_layer.1} parent=1 // pred_check
      _
    $region19: #{transformer_encoder_layer.1} parent=1 // pred_check_branch
      %1196 = sbr.rel (0) target = $region21
    $region20: #{transformer_encoder_layer.1} parent=1 // pred_region
      %s1198 = ssub.s32 256, 256
      %1199 = vsyncadd [#allocation4], %s1198
      %s1200 = sshll.u32 [#allocation7], 4
      %s1201 = int_to_ptr.vmem [resolvable:$true] %s1200
      %1206 = dma.vmem_to_hbm [thread:$0]  %s1201, 256, %s2, [#allocation4], 128, 128, 8
    $region21: #{transformer_encoder_layer.1} parent=1 // pred_fallthru
      _
    // Predicated region
    $region22: #{transformer_encoder_layer.1} parent=1 // pred_check
      _
    $region23: #{transformer_encoder_layer.1} parent=1 // pred_check_branch
      %1208 = sbr.rel (0) target = $region25
    $region24: #{transformer_encoder_layer.1} parent=1 // pred_region
      %1209 = dma.done [#allocation4], 256
    $region25: #{transformer_encoder_layer.1} parent=1 // pred_fallthru
      _
    %1210 = vsyncpa [#allocation3], 1
    %1211 = vsyncpa [#allocation6], 1
    %1212 = vsyncpa [#allocation4], 1

</llo_original>
